<compile_context>
chip_gen: v5e
topology: v5e:2x2
jax: 0.10.0
libtpu: 0.0.40
codegen_flags: <defaults>
</compile_context>

<pallas_src>
import functools

import jax
import jax.numpy as jnp
from jax import lax
from jax.experimental import pallas as pl
from jax.experimental.pallas import tpu as pltpu

F32 = jnp.float32

_VGG_MEAN = (0.485, 0.456, 0.406)
_VGG_STD = (0.229, 0.224, 0.225)

_VMEM_LIMIT = 48 * 1024 * 1024   # fits v7x's 64 MiB physical VMEM with headroom


# ----------------------------------------------------------------------------
# small helpers
# ----------------------------------------------------------------------------
def _pick_tile(n, pref=512):
    """Largest 128-multiple tile <= pref that divides n, else the full extent."""
    if n <= pref:
        return n
    for t in range(pref, 127, -128):
        if n % t == 0 and t % 128 == 0:
            return t
    return n


def _fold_vgg_norm(w, b):
    """Fold (x - mean) / std into a channels-first (Cout, 3) conv weight + (Cout, 1) bias."""
    mean = jnp.array(_VGG_MEAN, F32)
    inv_std = jnp.array([1.0 / s for s in _VGG_STD], F32)
    w2 = w * inv_std[None, :]
    b2 = b - (w @ (mean * inv_std))[:, None]
    return w2, b2


def _make_pool_matrix(Hc, Wc):
    """(Hc*Wc, (Hc/2)*(Wc/2)) matrix implementing 2x2 average pooling on flat tile pixels."""
    Ho, Wo = Hc // 2, Wc // 2
    src = jnp.arange(Hc * Wc)
    sy, sx = src // Wc, src % Wc
    out_idx = (sy // 2) * Wo + (sx // 2)
    return (out_idx[:, None] == jnp.arange(Ho * Wo)[None, :]).astype(F32) * 0.25


# ----------------------------------------------------------------------------
# kernels
# ----------------------------------------------------------------------------
def _styler_kernel(x_ref, s1_ref, s2_ref, bank_ref,
                   win_ref, bin_ref, wh_ref, bh_ref, wout_ref, bout_ref,
                   g_ref, s1o_ref, s2o_ref):
    # Fused vgg_norm (pre-folded into win/bin) + synthetic recurrent stylizer.
    x = x_ref[0]
    s1 = s1_ref[0]
    s2 = s2_ref[0]
    h = jax.nn.relu(jnp.dot(win_ref[...], x, preferred_element_type=F32) + bin_ref[...])
    s1n = jnp.tanh(h + s1)
    s2n = jnp.tanh(jnp.dot(wh_ref[...], s1n, preferred_element_type=F32)
                   + bh_ref[...] + bank_ref[...] + s2)
    g = jax.nn.sigmoid(jnp.dot(wout_ref[...], s2n, preferred_element_type=F32) + bout_ref[...])
    g_ref[0] = g
    s1o_ref[0] = s1n
    s2o_ref[0] = s2n


def _vgg_kernel(x_ref, w1, b1, w2, b2, w3, b3, w4, b4, q1, q2, q3,
                f1_ref, f2_ref, f3_ref, f4_ref):
    # One TBxTB spatial tile of one image: fused vgg_norm (folded into w1/b1) + 4 pointwise
    # conv stages + 3 block-local 2x2 avg pools expressed as tiny (P, P/4) matmuls.
    x = x_ref[0]                                                            # (3, P0)
    f1 = jax.nn.relu(jnp.dot(w1[...], x, preferred_element_type=F32) + b1[...])
    f1_ref[0] = f1
    h = jnp.dot(f1, q1[...], preferred_element_type=F32)                    # (C1, P0/4)
    f2 = jax.nn.relu(jnp.dot(w2[...], h, preferred_element_type=F32) + b2[...])
    f2_ref[0] = f2
    h = jnp.dot(f2, q2[...], preferred_element_type=F32)                    # (C2, P0/16)
    f3 = jax.nn.relu(jnp.dot(w3[...], h, preferred_element_type=F32) + b3[...])
    f3_ref[0] = f3
    h = jnp.dot(f3, q3[...], preferred_element_type=F32)                    # (C3, P0/64)
    f4 = jax.nn.relu(jnp.dot(w4[...], h, preferred_element_type=F32) + b4[...])
    f4_ref[0] = f4


def _warp_temporal_kernel(H, W, TS, inv_count, hit_ref,
                          c2_ref, g2_ref, flo_ref, c1_ref, g1_ref,
                          o_ref, acc_c_ref, acc_g_ref, cov_ref):
    # Fused: bilinear grid_sample of c2 AND g2 (shared weights/coords), PyTorch-style
    # validity mask (cover >= 0.9999), occlusion mask exp(-20*(sum_c(c1-warp(c2)))^2) and
    # the masked-L1 temporal loss (streaming mean).  The source-pixel axis (s) is a grid
    # reduction axis so the per-step gather matrix is only (TS, TQ); a scalar-prefetched
    # hit mask skips source tiles the flow cannot reach.
    b, q, s = pl.program_id(0), pl.program_id(1), pl.program_id(2)
    nQ, nS = pl.num_programs(1), pl.num_programs(2)

    @pl.when((b == 0) & (q == 0) & (s == 0))
    def _():
        o_ref[...] = jnp.zeros(o_ref.shape, o_ref.dtype)

    @pl.when(s == 0)
    def _():
        acc_c_ref[...] = jnp.zeros(acc_c_ref.shape, acc_c_ref.dtype)
        acc_g_ref[...] = jnp.zeros(acc_g_ref.shape, acc_g_ref.dtype)
        cov_ref[...] = jnp.zeros(cov_ref.shape, cov_ref.dtype)

    hit = hit_ref[(b * nQ + q) * nS + s]

    @pl.when(hit > 0)
    def _():
        flo = flo_ref[0]                       # (2, TQ)
        gx = flo[0:1, :]
        gy = flo[1:2, :]
        # F.grid_sample, align_corners=False, padding_mode='zeros'
        ix = ((gx + 1.0) * W - 1.0) * 0.5
        iy = ((gy + 1.0) * H - 1.0) * 0.5
        x0f = jnp.floor(ix)
        y0f = jnp.floor(iy)
        wx1 = ix - x0f
        wx0 = 1.0 - wx1
        wy1 = iy - y0f
        wy0 = 1.0 - wy1
        x0 = x0f.astype(jnp.int32)
        y0 = y0f.astype(jnp.int32)
        x1 = x0 + 1
        y1 = y0 + 1
        TQ = flo.shape[1]
        pi = s * TS + lax.broadcasted_iota(jnp.int32, (TS, TQ), 0)   # absolute src index

        def corner(xc, yc, w):
            valid = (xc >= 0) & (xc < W) & (yc >= 0) & (yc < H)
            sel = (pi == yc * W + xc) & valid
            return jnp.where(sel, w, jnp.zeros((), F32))

        M = (corner(x0, y0, wx0 * wy0) + corner(x1, y0, wx1 * wy0)
             + corner(x0, y1, wx0 * wy1) + corner(x1, y1, wx1 * wy1))
        acc_c_ref[...] += jnp.dot(c2_ref[0], M, preferred_element_type=F32)
        acc_g_ref[...] += jnp.dot(g2_ref[0], M, preferred_element_type=F32)
        cov_ref[...] += jnp.sum(M, axis=0, keepdims=True)

    @pl.when(s == nS - 1)
    def _():
        mvalid = (cov_ref[...] >= 0.9999).astype(F32)                # (1, TQ)
        wc2 = acc_c_ref[...] * mvalid                                # warp(content2)
        wg2 = acc_g_ref[...] * mvalid                                # warp(g_t2)
        d = jnp.sum(c1_ref[0] - wc2, axis=0, keepdims=True)          # (1, TQ)
        occ = jnp.exp(-20.0 * d * d)
        diff = occ * (wg2 - g1_ref[0])
        o_ref[...] += jnp.sum(jnp.abs(diff)) * inv_count


def _mse_kernel(inv_count, a_ref, b_ref, o_ref):
    @pl.when(pl.program_id(0) == 0)
    def _():
        o_ref[...] = jnp.zeros(o_ref.shape, o_ref.dtype)

    d = a_ref[...] - b_ref[...]
    o_ref[...] += jnp.sum(d * d) * inv_count


def _gram_loss_kernel(B, gram_scale, out_scale, ab_ref, o_ref, gd_ref):
    # Streaming gram accumulation with a single stacked dot_general over [a; b] (2B, C, T):
    # gd += (A A^T - B B^T)/(C*HW); squared-difference mean emitted at the final tile.
    k = pl.program_id(0)

    @pl.when(k == 0)
    def _():
        gd_ref[...] = jnp.zeros(gd_ref.shape, gd_ref.dtype)
        o_ref[...] = jnp.zeros(o_ref.shape, o_ref.dtype)

    ab = ab_ref[...]                                                  # (2B, C, T)
    dn = (((2,), (2,)), ((0,), (0,)))                                 # contract pixels, batch
    g = lax.dot_general(ab, ab, dn, preferred_element_type=F32)       # (2B, C, C)
    gd_ref[...] += (g[:B] - g[B:]) * gram_scale

    @pl.when(k == pl.num_programs(0) - 1)
    def _():
        d = gd_ref[...]
        o_ref[...] += jnp.sum(d * d) * out_scale


# ----------------------------------------------------------------------------
# wrappers
# ----------------------------------------------------------------------------
def styler_apply(x, s1, s2, bank, p):
    # x: (B, 3, HW), states: (B, Hd, HW)
    B, _, HW = x.shape
    Hd = p["wh"].shape[0]
    T = _pick_tile(HW, 2048)
    nT = HW // T
    bank_bias = p["bank_table"][bank][:, None]                        # (Hd, 1)
    full0 = lambda b, t: (0, 0)
    img_spec = lambda c: pl.BlockSpec((1, c, T), lambda b, t: (b, 0, t))

    g, s1n, s2n = pl.pallas_call(
        _styler_kernel,
        out_shape=(jax.ShapeDtypeStruct((B, 3, HW), F32),
                   jax.ShapeDtypeStruct((B, Hd, HW), F32),
                   jax.ShapeDtypeStruct((B, Hd, HW), F32)),
        grid=(B, nT),
        in_specs=[img_spec(3), img_spec(Hd), img_spec(Hd),
                  pl.BlockSpec((Hd, 1), full0),
                  pl.BlockSpec((Hd, 3), full0), pl.BlockSpec((Hd, 1), full0),
                  pl.BlockSpec((Hd, Hd), full0), pl.BlockSpec((Hd, 1), full0),
                  pl.BlockSpec((3, Hd), full0), pl.BlockSpec((3, 1), full0)],
        out_specs=(img_spec(3), img_spec(Hd), img_spec(Hd)),
        compiler_params=pltpu.CompilerParams(
            dimension_semantics=("parallel", "parallel")),
    )(x, s1, s2, bank_bias, p["win_f"], p["bin_f"], p["wh"], p["bh"], p["wout"], p["bout"])
    return g, s1n, s2n


def vgg_forward_fused(images, vgg_p, H, W):
    """Run the fused VGG stand-in on several images in ONE pallas_call.

    images: list of (B, 3, H*W).  Returns, per image, 4 feature maps of shape
    (B, Ci, H*W / 4**i) in tile-major pixel order (consistent across all images, which is
    all the content / gram losses need).
    """
    n_img = len(images)
    B = images[0].shape[0]
    TB = vgg_p["tile"]
    nTh, nTw = H // TB, W // TB
    nT = nTh * nTw
    P0 = TB * TB

    x = jnp.concatenate(images, axis=0)                               # (n_img*B, 3, HW)
    NB = n_img * B
    xt = (x.reshape(NB, 3, nTh, TB, nTw, TB)
            .transpose(0, 2, 4, 1, 3, 5)
            .reshape(NB * nT, 3, P0))
    G = NB * nT

    ws, bs, qs = vgg_p["w"], vgg_p["b"], vgg_p["pool"]
    chans = [w.shape[0] for w in ws]
    full0 = lambda g: (0, 0)

    in_specs = [pl.BlockSpec((1, 3, P0), lambda g: (g, 0, 0))]
    args = [xt]
    for i in range(4):
        in_specs += [pl.BlockSpec(ws[i].shape, full0), pl.BlockSpec(bs[i].shape, full0)]
        args += [ws[i], bs[i]]
    for i in range(3):
        in_specs += [pl.BlockSpec(qs[i].shape, full0)]
        args += [qs[i]]

    out_shapes = tuple(jax.ShapeDtypeStruct((G, chans[i], P0 // (4 ** i)), F32)
                       for i in range(4))
    out_specs = tuple(pl.BlockSpec((1, chans[i], P0 // (4 ** i)), lambda g: (g, 0, 0))
                      for i in range(4))

    feats = pl.pallas_call(
        _vgg_kernel,
        out_shape=out_shapes,
        grid=(G,),
        in_specs=in_specs,
        out_specs=out_specs,
        compiler_params=pltpu.CompilerParams(
            dimension_semantics=("parallel",),
            vmem_limit_bytes=_VMEM_LIMIT),
    )(*args)

    # TODO(synk): fuse the gram / MSE partial accumulation into this kernel's epilogue to
    # avoid writing the feature pyramids to HBM and re-reading them in the loss kernels.
    outs = []
    for k in range(n_img):
        per = []
        for i in range(4):
            Ci = chans[i]
            Pi = P0 // (4 ** i)
            f = feats[i].reshape(n_img, B, nT, Ci, Pi)[k]             # (B, nT, Ci, Pi)
            f = f.transpose(0, 2, 1, 3).reshape(B, Ci, nT * Pi)       # tile-major pixels
            per.append(f)
        outs.append(per)
    return outs


def _compute_hit_mask(flow, H, W, TQ, TS):
    """Conservative (never false-negative) per-(b, q, s) hit mask for the warp gather."""
    B = flow.shape[0]
    HW = H * W
    nQ, nS = HW // TQ, HW // TS
    ix = ((flow[:, 0, :] + 1.0) * W - 1.0) * 0.5
    iy = ((flow[:, 1, :] + 1.0) * H - 1.0) * 0.5
    x0 = jnp.floor(ix)
    y0 = jnp.floor(iy)
    lo = y0 * W + x0                       # lower bound on any sampled source index
    hi = (y0 + 1.0) * W + (x0 + 1.0)       # upper bound
    lo = lo.reshape(B, nQ, TQ).min(axis=-1)
    hi = hi.reshape(B, nQ, TQ).max(axis=-1)
    s_lo = jnp.arange(nS, dtype=F32) * TS
    s_hi = s_lo + TS
    hit = (hi[..., None] >= s_lo[None, None, :]) & (lo[..., None] < s_hi[None, None, :])
    return hit.astype(jnp.int32).reshape(-1)                           # (B*nQ*nS,)


def warp_temporal_loss(c1, c2, g1, g2, flow, H, W):
    """Fused warp(c2)+warp(g2)+occlusion-mask+masked-L1 temporal loss (scalar)."""
    B, C, HW = c1.shape
    TQ = _pick_tile(HW, 512)
    TS = _pick_tile(HW, 512)
    nQ, nS = HW // TQ, HW // TS
    hit = _compute_hit_mask(flow, H, W, TQ, TS)

    kernel = functools.partial(_warp_temporal_kernel, H, W, TS, 1.0 / (B * C * HW))
    grid_spec = pltpu.PrefetchScalarGridSpec(
        num_scalar_prefetch=1,
        grid=(B, nQ, nS),
        in_specs=[pl.BlockSpec((1, C, TS), lambda b, q, s, hit: (b, 0, s)),   # content2
                  pl.BlockSpec((1, C, TS), lambda b, q, s, hit: (b, 0, s)),   # g_t2
                  pl.BlockSpec((1, 2, TQ), lambda b, q, s, hit: (b, 0, q)),   # flow
                  pl.BlockSpec((1, C, TQ), lambda b, q, s, hit: (b, 0, q)),   # content1
                  pl.BlockSpec((1, C, TQ), lambda b, q, s, hit: (b, 0, q))],  # g_t1
        out_specs=pl.BlockSpec((1, 1), lambda b, q, s, hit: (0, 0)),
        scratch_shapes=[pltpu.VMEM((C, TQ), F32),
                        pltpu.VMEM((C, TQ), F32),
                        pltpu.VMEM((1, TQ), F32)])
    # TODO(synk): emit per-batch partial sums (batch axis 'parallel') to use both v7x cores.
    out = pl.pallas_call(
        kernel,
        out_shape=jax.ShapeDtypeStruct((1, 1), F32),
        grid_spec=grid_spec,
        compiler_params=pltpu.CompilerParams(
            dimension_semantics=("arbitrary", "arbitrary", "arbitrary"),
            vmem_limit_bytes=_VMEM_LIMIT),
    )(hit, c2, g2, flow, c1, g1)
    return out[0, 0]


def mse_loss(a, b):
    B, C, M = a.shape
    a2 = a.reshape(B * C, M)
    b2 = b.reshape(B * C, M)
    T = _pick_tile(M, 2048)
    nT = M // T
    kernel = functools.partial(_mse_kernel, 1.0 / (B * C * M))
    out = pl.pallas_call(
        kernel,
        out_shape=jax.ShapeDtypeStruct((1, 1), F32),
        grid=(nT,),
        in_specs=[pl.BlockSpec((B * C, T), lambda t: (0, t)),
                  pl.BlockSpec((B * C, T), lambda t: (0, t))],
        out_specs=pl.BlockSpec((1, 1), lambda t: (0, 0)),
        compiler_params=pltpu.CompilerParams(dimension_semantics=("arbitrary",)),
    )(a2, b2)
    return out[0, 0]


def gram_style_loss(a, b):
    B, C, M = a.shape
    ab = jnp.concatenate([a, b], axis=0)                              # (2B, C, M)
    T = _pick_tile(M, 2048)
    nT = M // T
    kernel = functools.partial(_gram_loss_kernel, B, 1.0 / (C * M), 1.0 / (B * C * C))
    out = pl.pallas_call(
        kernel,
        out_shape=jax.ShapeDtypeStruct((1, 1), F32),
        grid=(nT,),
        in_specs=[pl.BlockSpec((2 * B, C, T), lambda t: (0, 0, t))],
        out_specs=pl.BlockSpec((1, 1), lambda t: (0, 0)),
        scratch_shapes=[pltpu.VMEM((B, C, C), F32)],
        compiler_params=pltpu.CompilerParams(dimension_semantics=("arbitrary",)),
    )(ab)
    return out[0, 0]


def synthetic_flow(content1, content2):
    # TODO(synk): flow_processor.get_flow is an external RAFT-style network; replaced by a
    # deterministic synthetic grid-normalized flow (identity grid + small content offset).
    B, _, H, W = content1.shape
    ys = (2.0 * jnp.arange(H, dtype=F32) + 1.0) / H - 1.0
    xs = (2.0 * jnp.arange(W, dtype=F32) + 1.0) / W - 1.0
    gy, gx = jnp.meshgrid(ys, xs, indexing="ij")
    base = jnp.stack([gx, gy], axis=0)[None]                          # (1, 2, H, W)
    off = 0.05 * jnp.tanh(jnp.mean(content1 - content2, axis=1, keepdims=True))
    flow = base + jnp.concatenate([off, off], axis=1)                 # (B, 2, H, W)
    return flow.reshape(B, 2, H * W)


# ----------------------------------------------------------------------------
# VideoNet.forward
# ----------------------------------------------------------------------------
def video_net_forward(content1, content2, style, prev_state1, prev_state2, bank, params):
    B, C, H, W = content1.shape
    HW = H * W
    c1 = content1.reshape(B, C, HW)
    c2 = content2.reshape(B, C, HW)
    st = style.reshape(B, C, HW)

    # ---- no_grad region: optical flow stand-in ----
    flow = synthetic_flow(content1, content2)                         # (B, 2, HW)

    # ---- styler (vgg_norm folded into first-layer weights); first call is no_grad ----
    sp = params["styler"]
    g1, rs1, rs2 = styler_apply(c1, prev_state1.reshape(B, -1, HW),
                                prev_state2.reshape(B, -1, HW), bank, sp)
    # repackage_hidden == detach
    g2, _ps1, _ps2 = styler_apply(c2, lax.stop_gradient(rs1), lax.stop_gradient(rs2),
                                  bank, sp)

    # ---- one fused VGG pass for content2 / style / g2 (weights resident once) ----
    content_feats, style_feats, output_feats = vgg_forward_fused([c2, st, g2],
                                                                 params["vgg"], H, W)

    loss_c = mse_loss(output_feats[2], lax.stop_gradient(content_feats[2]))
    loss_s = jnp.zeros((), F32)
    for i in range(4):
        loss_s = loss_s + gram_style_loss(output_feats[i], lax.stop_gradient(style_feats[i]))

    # ---- temporal loss: warp(c2)+warp(g2)+occlusion mask+masked-L1, all in one kernel ----
    loss_t = warp_temporal_loss(c1, c2, lax.stop_gradient(g1), g2, flow, H, W)

    return (loss_c, loss_s, loss_t,
            g1.reshape(B, C, H, W), g2.reshape(B, C, H, W),
            rs1.reshape(B, -1, H, W), rs2.reshape(B, -1, H, W))


# ----------------------------------------------------------------------------
# deterministic parameter init (synthetic stand-ins for styler / vgg weights)
# ----------------------------------------------------------------------------
def init_params(key, hidden, H, W):
    ks = jax.random.split(key, 12)

    def w(k, cout, cin):
        return (jax.random.normal(k, (cout, cin), F32) / jnp.sqrt(float(cin))).astype(F32)

    win = w(ks[0], hidden, 3)
    bin_ = jnp.zeros((hidden, 1), F32)
    win_f, bin_f = _fold_vgg_norm(win, bin_)
    styler_p = dict(
        win_f=win_f, bin_f=bin_f,
        wh=w(ks[1], hidden, hidden), bh=jnp.zeros((hidden, 1), F32),
        wout=w(ks[2], 3, hidden), bout=jnp.zeros((3, 1), F32),
        bank_table=0.1 * jax.random.normal(ks[3], (4, hidden), F32),
    )

    chans = [3, 8, 16, 32, 32]
    ws, bs = [], []
    for i in range(4):
        wm = w(ks[4 + i], chans[i + 1], chans[i])
        bm = jnp.zeros((chans[i + 1], 1), F32)
        if i == 0:
            wm, bm = _fold_vgg_norm(wm, bm)
        ws.append(wm)
        bs.append(bm)

    # spatial-tile size for the VGG (pool-aligned); pooling matrices are tile-local & tiny.
    if H % 16 == 0 and W % 16 == 0:
        TB = 16
    elif H % 8 == 0 and W % 8 == 0:
        TB = 8
    else:
        TB = min(H, W)
    pools, t = [], TB
    for _ in range(3):
        pools.append(_make_pool_matrix(t, t))
        t //= 2

    return dict(styler=styler_p, vgg=dict(w=ws, b=bs, pool=pools, tile=TB))


# ----------------------------------------------------------------------------
if __name__ == "__main__":
    B, C, H, W, HID = 2, 3, 16, 16, 8
    key = jax.random.PRNGKey(0)
    k = jax.random.split(key, 4)

    content1 = jax.random.uniform(k[0], (B, C, H, W), F32)   # NCHW like PyTorch
    content2 = jax.random.uniform(k[1], (B, C, H, W), F32)
    style = jax.random.uniform(k[2], (B, C, H, W), F32)
    prev_state1 = jnp.zeros((B, HID, H, W), F32)
    prev_state2 = jnp.zeros((B, HID, H, W), F32)
    bank = 1

    params = init_params(jax.random.PRNGKey(1), HID, H, W)

    outs = video_net_forward(content1, content2, style, prev_state1, prev_state2, bank, params)
    outs = jax.block_until_ready(outs)

    loss_c, loss_s, loss_t, g_t1, g_t2, rs1, rs2 = outs
    for v in (loss_c, loss_s, loss_t):
        assert bool(jnp.isfinite(v)), "non-finite loss"
    assert g_t1.shape == (B, C, H, W) and g_t2.shape == (B, C, H, W)
    assert rs1.shape == (B, HID, H, W) and rs2.shape == (B, HID, H, W)
    print("KERNEL_OK")
</pallas_src>

<mosaic_0001>
module attributes {stable_mosaic.version = 11 : i64} {
  func.func @_styler_kernel(%arg0: i32, %arg1: i32, %arg2: memref<1x3x256xf32, #tpu.memory_space<vmem>>, %arg3: memref<1x8x256xf32, #tpu.memory_space<vmem>>, %arg4: memref<1x8x256xf32, #tpu.memory_space<vmem>>, %arg5: memref<8x1xf32, #tpu.memory_space<vmem>>, %arg6: memref<8x3xf32, #tpu.memory_space<vmem>>, %arg7: memref<8x1xf32, #tpu.memory_space<vmem>>, %arg8: memref<8x8xf32, #tpu.memory_space<vmem>>, %arg9: memref<8x1xf32, #tpu.memory_space<vmem>>, %arg10: memref<3x8xf32, #tpu.memory_space<vmem>>, %arg11: memref<3x1xf32, #tpu.memory_space<vmem>>, %arg12: memref<1x3x256xf32, #tpu.memory_space<vmem>>, %arg13: memref<1x8x256xf32, #tpu.memory_space<vmem>>, %arg14: memref<1x8x256xf32, #tpu.memory_space<vmem>>) attributes {dimension_semantics = [#tpu.dimension_semantics<parallel>, #tpu.dimension_semantics<parallel>], iteration_bounds = array<i64: 2, 1>, scalar_prefetch = 0 : i64, scratch_operands = 0 : i64, tpu.core_type = #tpu.core_type<tc>, window_params = [{transform_indices = @transform_0, window_bounds = array<i64: 1, 3, 256>}, {transform_indices = @transform_1, window_bounds = array<i64: 1, 8, 256>}, {transform_indices = @transform_2, window_bounds = array<i64: 1, 8, 256>}, {pipeline_mode = #tpu.pipeline_mode<synchronous>, transform_indices = @transform_3, window_bounds = array<i64: 8, 1>}, {pipeline_mode = #tpu.pipeline_mode<synchronous>, transform_indices = @transform_4, window_bounds = array<i64: 8, 3>}, {pipeline_mode = #tpu.pipeline_mode<synchronous>, transform_indices = @transform_5, window_bounds = array<i64: 8, 1>}, {pipeline_mode = #tpu.pipeline_mode<synchronous>, transform_indices = @transform_6, window_bounds = array<i64: 8, 8>}, {pipeline_mode = #tpu.pipeline_mode<synchronous>, transform_indices = @transform_7, window_bounds = array<i64: 8, 1>}, {pipeline_mode = #tpu.pipeline_mode<synchronous>, transform_indices = @transform_8, window_bounds = array<i64: 3, 8>}, {pipeline_mode = #tpu.pipeline_mode<synchronous>, transform_indices = @transform_9, window_bounds = array<i64: 3, 1>}, {transform_indices = @transform_10, window_bounds = array<i64: 1, 3, 256>}, {transform_indices = @transform_11, window_bounds = array<i64: 1, 8, 256>}, {transform_indices = @transform_12, window_bounds = array<i64: 1, 8, 256>}]} {
    %c0 = arith.constant 0 : index
    %c0_0 = arith.constant 0 : index
    %c0_1 = arith.constant 0 : index
    %0 = vector.load %arg2[%c0, %c0_0, %c0_1] : memref<1x3x256xf32, #tpu.memory_space<vmem>>, vector<1x3x256xf32>
    %1 = vector.shape_cast %0 : vector<1x3x256xf32> to vector<3x256xf32>
    %c0_2 = arith.constant 0 : index
    %c0_3 = arith.constant 0 : index
    %c0_4 = arith.constant 0 : index
    %2 = vector.load %arg3[%c0_2, %c0_3, %c0_4] : memref<1x8x256xf32, #tpu.memory_space<vmem>>, vector<1x8x256xf32>
    %3 = vector.shape_cast %2 : vector<1x8x256xf32> to vector<8x256xf32>
    %c0_5 = arith.constant 0 : index
    %c0_6 = arith.constant 0 : index
    %c0_7 = arith.constant 0 : index
    %4 = vector.load %arg4[%c0_5, %c0_6, %c0_7] : memref<1x8x256xf32, #tpu.memory_space<vmem>>, vector<1x8x256xf32>
    %5 = vector.shape_cast %4 : vector<1x8x256xf32> to vector<8x256xf32>
    %c0_8 = arith.constant 0 : index
    %c0_9 = arith.constant 0 : index
    %6 = vector.load %arg6[%c0_8, %c0_9] : memref<8x3xf32, #tpu.memory_space<vmem>>, vector<8x3xf32>
    %cst = arith.constant dense<0.000000e+00> : vector<8x256xf32>
    %7 = tpu.matmul %6, %1, %cst {dimension_numbers = #tpu.dot_dimension_numbers<[1], [0], [0], [1], [0, 0, 1, 1], [], []>} : vector<8x3xf32>, vector<3x256xf32>, vector<8x256xf32> -> vector<8x256xf32>
    %c0_10 = arith.constant 0 : index
    %c0_11 = arith.constant 0 : index
    %8 = vector.load %arg7[%c0_10, %c0_11] : memref<8x1xf32, #tpu.memory_space<vmem>>, vector<8x1xf32>
    %9 = vector.broadcast %8 : vector<8x1xf32> to vector<8x256xf32>
    %10 = arith.addf %7, %9 : vector<8x256xf32>
    %cst_12 = arith.constant 0.000000e+00 : f32
    %11 = vector.broadcast %cst_12 : f32 to vector<8x256xf32>
    %12 = arith.maximumf %10, %11 : vector<8x256xf32>
    %13 = arith.addf %12, %3 : vector<8x256xf32>
    %14 = math.tanh %13 : vector<8x256xf32>
    %c0_13 = arith.constant 0 : index
    %c0_14 = arith.constant 0 : index
    %15 = vector.load %arg8[%c0_13, %c0_14] : memref<8x8xf32, #tpu.memory_space<vmem>>, vector<8x8xf32>
    %cst_15 = arith.constant dense<0.000000e+00> : vector<8x256xf32>
    %16 = tpu.matmul %15, %14, %cst_15 {dimension_numbers = #tpu.dot_dimension_numbers<[1], [0], [0], [1], [0, 0, 1, 1], [], []>} : vector<8x8xf32>, vector<8x256xf32>, vector<8x256xf32> -> vector<8x256xf32>
    %c0_16 = arith.constant 0 : index
    %c0_17 = arith.constant 0 : index
    %17 = vector.load %arg9[%c0_16, %c0_17] : memref<8x1xf32, #tpu.memory_space<vmem>>, vector<8x1xf32>
    %18 = vector.broadcast %17 : vector<8x1xf32> to vector<8x256xf32>
    %19 = arith.addf %16, %18 : vector<8x256xf32>
    %c0_18 = arith.constant 0 : index
    %c0_19 = arith.constant 0 : index
    %20 = vector.load %arg5[%c0_18, %c0_19] : memref<8x1xf32, #tpu.memory_space<vmem>>, vector<8x1xf32>
    %21 = vector.broadcast %20 : vector<8x1xf32> to vector<8x256xf32>
    %22 = arith.addf %19, %21 : vector<8x256xf32>
    %23 = arith.addf %22, %5 : vector<8x256xf32>
    %24 = math.tanh %23 : vector<8x256xf32>
    %c0_20 = arith.constant 0 : index
    %c0_21 = arith.constant 0 : index
    %25 = vector.load %arg10[%c0_20, %c0_21] : memref<3x8xf32, #tpu.memory_space<vmem>>, vector<3x8xf32>
    %cst_22 = arith.constant dense<0.000000e+00> : vector<3x256xf32>
    %26 = tpu.matmul %25, %24, %cst_22 {dimension_numbers = #tpu.dot_dimension_numbers<[1], [0], [0], [1], [0, 0, 1, 1], [], []>} : vector<3x8xf32>, vector<8x256xf32>, vector<3x256xf32> -> vector<3x256xf32>
    %c0_23 = arith.constant 0 : index
    %c0_24 = arith.constant 0 : index
    %27 = vector.load %arg11[%c0_23, %c0_24] : memref<3x1xf32, #tpu.memory_space<vmem>>, vector<3x1xf32>
    %28 = vector.broadcast %27 : vector<3x1xf32> to vector<3x256xf32>
    %29 = arith.addf %26, %28 : vector<3x256xf32>
    %30 = arith.negf %29 : vector<3x256xf32>
    %31 = math.exp %30 : vector<3x256xf32>
    %cst_25 = arith.constant 1.000000e+00 : f32
    %32 = vector.broadcast %cst_25 : f32 to vector<3x256xf32>
    %33 = arith.addf %32, %31 : vector<3x256xf32>
    %34 = arith.divf %32, %33 : vector<3x256xf32>
    %c0_26 = arith.constant 0 : index
    %c0_27 = arith.constant 0 : index
    %c0_28 = arith.constant 0 : index
    %35 = vector.load %arg12[%c0_26, %c0_27, %c0_28] : memref<1x3x256xf32, #tpu.memory_space<vmem>>, vector<1x3x256xf32>
    %36 = vector.shape_cast %35 : vector<1x3x256xf32> to vector<3x256xf32>
    %37 = vector.shape_cast %34 : vector<3x256xf32> to vector<1x3x256xf32>
    tpu.vector_store %arg12[%c0_26, %c0_27, %c0_28], %37 {strides = array<i32>} : memref<1x3x256xf32, #tpu.memory_space<vmem>>, vector<1x3x256xf32>,
    %c0_29 = arith.constant 0 : index
    %c0_30 = arith.constant 0 : index
    %c0_31 = arith.constant 0 : index
    %38 = vector.load %arg13[%c0_29, %c0_30, %c0_31] : memref<1x8x256xf32, #tpu.memory_space<vmem>>, vector<1x8x256xf32>
    %39 = vector.shape_cast %38 : vector<1x8x256xf32> to vector<8x256xf32>
    %40 = vector.shape_cast %14 : vector<8x256xf32> to vector<1x8x256xf32>
    tpu.vector_store %arg13[%c0_29, %c0_30, %c0_31], %40 {strides = array<i32>} : memref<1x8x256xf32, #tpu.memory_space<vmem>>, vector<1x8x256xf32>,
    %c0_32 = arith.constant 0 : index
    %c0_33 = arith.constant 0 : index
    %c0_34 = arith.constant 0 : index
    %41 = vector.load %arg14[%c0_32, %c0_33, %c0_34] : memref<1x8x256xf32, #tpu.memory_space<vmem>>, vector<1x8x256xf32>
    %42 = vector.shape_cast %41 : vector<1x8x256xf32> to vector<8x256xf32>
    %43 = vector.shape_cast %24 : vector<8x256xf32> to vector<1x8x256xf32>
    tpu.vector_store %arg14[%c0_32, %c0_33, %c0_34], %43 {strides = array<i32>} : memref<1x8x256xf32, #tpu.memory_space<vmem>>, vector<1x8x256xf32>,
    return
  }
  func.func @transform_0(%arg0: i32, %arg1: i32) -> (i32, i32, i32) {
    %c0_i32 = arith.constant 0 : i32
    %c0_i32_0 = arith.constant 0 : i32
    return %arg0, %c0_i32, %arg1 : i32, i32, i32
  }
  func.func @transform_1(%arg0: i32, %arg1: i32) -> (i32, i32, i32) {
    %c0_i32 = arith.constant 0 : i32
    %c0_i32_0 = arith.constant 0 : i32
    return %arg0, %c0_i32, %arg1 : i32, i32, i32
  }
  func.func @transform_2(%arg0: i32, %arg1: i32) -> (i32, i32, i32) {
    %c0_i32 = arith.constant 0 : i32
    %c0_i32_0 = arith.constant 0 : i32
    return %arg0, %c0_i32, %arg1 : i32, i32, i32
  }
  func.func @transform_3(%arg0: i32, %arg1: i32) -> (i32, i32) {
    %c0_i32 = arith.constant 0 : i32
    %c0_i32_0 = arith.constant 0 : i32
    %c0_i32_1 = arith.constant 0 : i32
    return %c0_i32, %c0_i32_0 : i32, i32
  }
  func.func @transform_4(%arg0: i32, %arg1: i32) -> (i32, i32) {
    %c0_i32 = arith.constant 0 : i32
    %c0_i32_0 = arith.constant 0 : i32
    %c0_i32_1 = arith.constant 0 : i32
    return %c0_i32, %c0_i32_0 : i32, i32
  }
  func.func @transform_5(%arg0: i32, %arg1: i32) -> (i32, i32) {
    %c0_i32 = arith.constant 0 : i32
    %c0_i32_0 = arith.constant 0 : i32
    %c0_i32_1 = arith.constant 0 : i32
    return %c0_i32, %c0_i32_0 : i32, i32
  }
  func.func @transform_6(%arg0: i32, %arg1: i32) -> (i32, i32) {
    %c0_i32 = arith.constant 0 : i32
    %c0_i32_0 = arith.constant 0 : i32
    %c0_i32_1 = arith.constant 0 : i32
    return %c0_i32, %c0_i32_0 : i32, i32
  }
  func.func @transform_7(%arg0: i32, %arg1: i32) -> (i32, i32) {
    %c0_i32 = arith.constant 0 : i32
    %c0_i32_0 = arith.constant 0 : i32
    %c0_i32_1 = arith.constant 0 : i32
    return %c0_i32, %c0_i32_0 : i32, i32
  }
  func.func @transform_8(%arg0: i32, %arg1: i32) -> (i32, i32) {
    %c0_i32 = arith.constant 0 : i32
    %c0_i32_0 = arith.constant 0 : i32
    %c0_i32_1 = arith.constant 0 : i32
    return %c0_i32, %c0_i32_0 : i32, i32
  }
  func.func @transform_9(%arg0: i32, %arg1: i32) -> (i32, i32) {
    %c0_i32 = arith.constant 0 : i32
    %c0_i32_0 = arith.constant 0 : i32
    %c0_i32_1 = arith.constant 0 : i32
    return %c0_i32, %c0_i32_0 : i32, i32
  }
  func.func @transform_10(%arg0: i32, %arg1: i32) -> (i32, i32, i32) {
    %c0_i32 = arith.constant 0 : i32
    %c0_i32_0 = arith.constant 0 : i32
    return %arg0, %c0_i32, %arg1 : i32, i32, i32
  }
  func.func @transform_11(%arg0: i32, %arg1: i32) -> (i32, i32, i32) {
    %c0_i32 = arith.constant 0 : i32
    %c0_i32_0 = arith.constant 0 : i32
    return %arg0, %c0_i32, %arg1 : i32, i32, i32
  }
  func.func @transform_12(%arg0: i32, %arg1: i32) -> (i32, i32, i32) {
    %c0_i32 = arith.constant 0 : i32
    %c0_i32_0 = arith.constant 0 : i32
    return %arg0, %c0_i32, %arg1 : i32, i32, i32
  }
}

</mosaic_0001>

<llo_original>
// kernel: tpu_custom_call.1
$region0: #{tpu_custom_call.1}
  #allocation0 [shape = 'u32[]', space=smem, size = 0x4, offset = 0x4, fixed_abs, tag = 'smem constant byte address 0x4 - core index']
  #allocation1 [shape = 'u32[72,128]{1,0:T(1,128)}', space=vmem, size = 0x9000, scoped, tag = 'internal scratch']
  %s0 = inlined_call_operand.vmem [shape: f32[2,3,256], index: 0, kind: input, shape index: {}]
  %s1 = inlined_call_operand.vmem [shape: f32[2,8,256], index: 1, kind: input, shape index: {}]
  %s2 = inlined_call_operand.hbm [shape: f32[2,8,256], index: 2, kind: input, shape index: {}]
  %s3 = inlined_call_operand.vmem [shape: f32[8,1], index: 3, kind: input, shape index: {}]
  %s4 = inlined_call_operand.vmem [shape: f32[8,3], index: 4, kind: input, shape index: {}]
  %s5 = inlined_call_operand.vmem [shape: f32[8,1], index: 5, kind: input, shape index: {}]
  %s6 = inlined_call_operand.vmem [shape: f32[8,8], index: 6, kind: input, shape index: {}]
  %s7 = inlined_call_operand.vmem [shape: f32[8,1], index: 7, kind: input, shape index: {}]
  %s8 = inlined_call_operand.vmem [shape: f32[3,8], index: 8, kind: input, shape index: {}]
  %s9 = inlined_call_operand.vmem [shape: f32[3,1], index: 9, kind: input, shape index: {}]
  %s10 = inlined_call_operand.vmem [shape: f32[2,3,256], index: 10, kind: output, shape index: {0}]
  %s11 = inlined_call_operand.hbm [shape: f32[2,8,256], index: 11, kind: output, shape index: {1}]
  %s12 = inlined_call_operand.hbm [shape: f32[2,8,256], index: 12, kind: output, shape index: {2}]
  %13 = xla_tuple %s10, %s11, %s12
  %s14 = sld [smem:[#allocation0]]
  $region93: #{tpu_custom_call.1} parent=0
    _
  %s16 = ssub.s32 1, %s14
  %s17 = scalar_select 0, %s16, %s14
  $region1: #{tpu_custom_call.1} parent=0
    #allocation2 [shape = 'u8[16384]{0}', space=vmem, size = 0x4000, scoped, tag = 'input window, operand 2']
    #allocation3 [shape = 's32[2]{0}', space=sflag, size = 0x8, scoped, tag = 'scoped memory for tpu_custom_call.1']
    #allocation4 [shape = 's32[2]{0}', space=sflag, size = 0x8, scoped, tag = 'scoped memory for tpu_custom_call.1']
    #allocation5 [shape = 'u8[16384]{0}', space=vmem, size = 0x4000, scoped, tag = 'output window, operand 1']
    #allocation6 [shape = 'u8[16384]{0}', space=vmem, size = 0x4000, scoped, tag = 'output window, operand 2']
    #allocation7 [shape = 's32[2]{0}', space=sflag, size = 0x8, scoped, tag = 'scoped memory for tpu_custom_call.1']
    %18 = vsyncpa [#allocation3], 0
    %s19 = scalar_lea.sflag [#allocation3], 1
    %20 = vsyncpa %s19, 0
    %21 = vsyncpa [#allocation4], 0
    %s22 = scalar_lea.sflag [#allocation4], 1
    %23 = vsyncpa %s22, 0
    %24 = vsyncpa [#allocation7], 0
    %s25 = scalar_lea.sflag [#allocation7], 1
    %26 = vsyncpa %s25, 0
    loop: start=0, step=1, limit=4
    $region2: #{tpu_custom_call.1} parent=1 // loop_pre_header
      _
    $region3: #{tpu_custom_call.1} parent=1 // loop_header
      %s28 = sphi 0, %s32
      %p29 = scmp.ge.s32.totalorder %s28, 4
      %s35 = sphi 0, %s47
      %s36 = sphi 0, %s43
      %s37 = sphi 0, %s35
      %s38 = sphi 0, %s36
      %s39 = sphi 0, %s37
      %s40 = sphi 0, %s38
      %s52 = sphi 0, %s54
      %s55 = sphi 0, %s52
      %s56 = sphi 0, %s55
      %s72 = sphi 0, %s56
      %s80 = sphi 0, %s82
      %s83 = sphi 0, %s80
      %s84 = sphi 0, %s83
      %s100 = sphi 0, %s84
      %s108 = sphi 0, %s110
      %s111 = sphi 0, %s108
      %s112 = sphi 0, %s111
      %s128 = sphi 0, %s112
      %s132 = sphi 0, %s132
      %s134 = sphi 0, %s132
      %s135 = sphi 0, %s134
      %s149 = sphi 0, %s135
      %s153 = sphi 0, %s153
      %s155 = sphi 0, %s153
      %s156 = sphi 0, %s155
      %s170 = sphi 0, %s156
      %s174 = sphi 0, %s174
      %s176 = sphi 0, %s174
      %s177 = sphi 0, %s176
      %s191 = sphi 0, %s177
      %s195 = sphi 0, %s195
      %s197 = sphi 0, %s195
      %s198 = sphi 0, %s197
      %s212 = sphi 0, %s198
      %s216 = sphi 0, %s216
      %s218 = sphi 0, %s216
      %s219 = sphi 0, %s218
      %s233 = sphi 0, %s219
      %s237 = sphi 0, %s237
      %s239 = sphi 0, %s237
      %s240 = sphi 0, %s239
      %s254 = sphi 0, %s240
      %s258 = sphi 0, %s258
      %s260 = sphi 0, %s258
      %s261 = sphi 0, %s260
      %s275 = sphi 0, %s261
      %s283 = sphi 0, %s285
      %s286 = sphi 0, %s283
      %s287 = sphi 0, %s286
      %s303 = sphi 0, %s287
      %s311 = sphi 0, %s313
      %s314 = sphi 0, %s311
      %s315 = sphi 0, %s314
      %s331 = sphi 0, %s315
      %s339 = sphi 0, %s341
      %s342 = sphi 0, %s339
      %s343 = sphi 0, %s342
      %s359 = sphi 0, %s343
    $region4: #{tpu_custom_call.1} parent=1 // loop_header_branch
      %31 = sbr.rel (%p29) target = $region8
    $region5: #{tpu_custom_call.1} parent=1 // loop_body
      %s33 = ssub.s32 %s28, 1
      %s34 = ssub.s32 %s28, 2
      %s41 = sadd.s32 1, %s36
      %p42 = scmp.ge.s32.totalorder %s41, 1
      %s43 = scalar_select %p42, 0, %s41
      %s44 = sadd.s32 1, %s35
      %s45 = scalar_select %p42, %s44, %s35
      %p46 = scmp.ge.s32.totalorder %s45, 2
      %s47 = scalar_select %p46, 0, %s45
      %s48 = ssub.s32 %s35, %s47
      %s49 = ssub.s32 %s36, %s43
      %s50 = sor.u32 %s48, %s49
      %p51 = scmp.eq.s32.totalorder %s50, 0
      %s53 = sadd.s32 %s52, 1
      %s54 = scalar_select %p51, %s52, %s53
      %p57 = pneg %p51
      %p58 = scmp.eq.s32.totalorder %s28, 1
      %p59 = por %p57, %p58
      %p60 = scmp.ne.s32.totalorder %s52, %s55
      %p61 = scmp.eq.s32.totalorder %s28, 0
      %p62 = por %p60, %p61
      %p63 = scmp.ne.s32.totalorder %s52, %s55
      %p64 = scmp.eq.s32.totalorder %s33, 1
      %p65 = por %p63, %p64
      %p66 = scmp.ne.s32.totalorder %s55, %s56
      %p67 = scmp.eq.s32.totalorder %s33, 0
      %p68 = por %p66, %p67
      %p69 = scmp.ne.s32.totalorder %s55, %s56
      %p70 = scmp.eq.s32.totalorder %s34, 1
      %p71 = por %p69, %p70
      %p73 = scmp.ne.s32.totalorder %s56, %s72
      %p74 = scmp.eq.s32.totalorder %s34, 0
      %p75 = por %p73, %p74
      %s76 = ssub.s32 %s35, %s47
      %s77 = ssub.s32 %s36, %s43
      %s78 = sor.u32 %s76, %s77
      %p79 = scmp.eq.s32.totalorder %s78, 0
      %s81 = sadd.s32 %s80, 1
      %s82 = scalar_select %p79, %s80, %s81
      %p85 = pneg %p79
      %p86 = scmp.eq.s32.totalorder %s28, 1
      %p87 = por %p85, %p86
      %p88 = scmp.ne.s32.totalorder %s80, %s83
      %p89 = scmp.eq.s32.totalorder %s28, 0
      %p90 = por %p88, %p89
      %p91 = scmp.ne.s32.totalorder %s80, %s83
      %p92 = scmp.eq.s32.totalorder %s33, 1
      %p93 = por %p91, %p92
      %p94 = scmp.ne.s32.totalorder %s83, %s84
      %p95 = scmp.eq.s32.totalorder %s33, 0
      %p96 = por %p94, %p95
      %p97 = scmp.ne.s32.totalorder %s83, %s84
      %p98 = scmp.eq.s32.totalorder %s34, 1
      %p99 = por %p97, %p98
      %p101 = scmp.ne.s32.totalorder %s84, %s100
      %p102 = scmp.eq.s32.totalorder %s34, 0
      %p103 = por %p101, %p102
      %s104 = ssub.s32 %s35, %s47
      %s105 = ssub.s32 %s36, %s43
      %s106 = sor.u32 %s104, %s105
      %p107 = scmp.eq.s32.totalorder %s106, 0
      %s109 = sadd.s32 %s108, 1
      %s110 = scalar_select %p107, %s108, %s109
      %p113 = pneg %p107
      %p114 = scmp.eq.s32.totalorder %s28, 1
      %p115 = por %p113, %p114
      %p116 = scmp.ne.s32.totalorder %s108, %s111
      %p117 = scmp.eq.s32.totalorder %s28, 0
      %p118 = por %p116, %p117
      %p119 = scmp.ne.s32.totalorder %s108, %s111
      %p120 = scmp.eq.s32.totalorder %s33, 1
      %p121 = por %p119, %p120
      %p122 = scmp.ne.s32.totalorder %s111, %s112
      %p123 = scmp.eq.s32.totalorder %s33, 0
      %p124 = por %p122, %p123
      %p125 = scmp.ne.s32.totalorder %s111, %s112
      %p126 = scmp.eq.s32.totalorder %s34, 1
      %p127 = por %p125, %p126
      %p129 = scmp.ne.s32.totalorder %s112, %s128
      %p130 = scmp.eq.s32.totalorder %s34, 0
      %p131 = por %p129, %p130
      %s133 = sadd.s32 %s132, 1
      %p136 = scmp.eq.s32.totalorder %s28, 1
      %p137 = scmp.ne.s32.totalorder %s132, %s134
      %p138 = scmp.eq.s32.totalorder %s28, 0
      %p139 = por %p137, %p138
      %p140 = scmp.ne.s32.totalorder %s132, %s134
      %p141 = scmp.eq.s32.totalorder %s33, 1
      %p142 = por %p140, %p141
      %p143 = scmp.ne.s32.totalorder %s134, %s135
      %p144 = scmp.eq.s32.totalorder %s33, 0
      %p145 = por %p143, %p144
      %p146 = scmp.ne.s32.totalorder %s134, %s135
      %p147 = scmp.eq.s32.totalorder %s34, 1
      %p148 = por %p146, %p147
      %p150 = scmp.ne.s32.totalorder %s135, %s149
      %p151 = scmp.eq.s32.totalorder %s34, 0
      %p152 = por %p150, %p151
      %s154 = sadd.s32 %s153, 1
      %p157 = scmp.eq.s32.totalorder %s28, 1
      %p158 = scmp.ne.s32.totalorder %s153, %s155
      %p159 = scmp.eq.s32.totalorder %s28, 0
      %p160 = por %p158, %p159
      %p161 = scmp.ne.s32.totalorder %s153, %s155
      %p162 = scmp.eq.s32.totalorder %s33, 1
      %p163 = por %p161, %p162
      %p164 = scmp.ne.s32.totalorder %s155, %s156
      %p165 = scmp.eq.s32.totalorder %s33, 0
      %p166 = por %p164, %p165
      %p167 = scmp.ne.s32.totalorder %s155, %s156
      %p168 = scmp.eq.s32.totalorder %s34, 1
      %p169 = por %p167, %p168
      %p171 = scmp.ne.s32.totalorder %s156, %s170
      %p172 = scmp.eq.s32.totalorder %s34, 0
      %p173 = por %p171, %p172
      %s175 = sadd.s32 %s174, 1
      %p178 = scmp.eq.s32.totalorder %s28, 1
      %p179 = scmp.ne.s32.totalorder %s174, %s176
      %p180 = scmp.eq.s32.totalorder %s28, 0
      %p181 = por %p179, %p180
      %p182 = scmp.ne.s32.totalorder %s174, %s176
      %p183 = scmp.eq.s32.totalorder %s33, 1
      %p184 = por %p182, %p183
      %p185 = scmp.ne.s32.totalorder %s176, %s177
      %p186 = scmp.eq.s32.totalorder %s33, 0
      %p187 = por %p185, %p186
      %p188 = scmp.ne.s32.totalorder %s176, %s177
      %p189 = scmp.eq.s32.totalorder %s34, 1
      %p190 = por %p188, %p189
      %p192 = scmp.ne.s32.totalorder %s177, %s191
      %p193 = scmp.eq.s32.totalorder %s34, 0
      %p194 = por %p192, %p193
      %s196 = sadd.s32 %s195, 1
      %p199 = scmp.eq.s32.totalorder %s28, 1
      %p200 = scmp.ne.s32.totalorder %s195, %s197
      %p201 = scmp.eq.s32.totalorder %s28, 0
      %p202 = por %p200, %p201
      %p203 = scmp.ne.s32.totalorder %s195, %s197
      %p204 = scmp.eq.s32.totalorder %s33, 1
      %p205 = por %p203, %p204
      %p206 = scmp.ne.s32.totalorder %s197, %s198
      %p207 = scmp.eq.s32.totalorder %s33, 0
      %p208 = por %p206, %p207
      %p209 = scmp.ne.s32.totalorder %s197, %s198
      %p210 = scmp.eq.s32.totalorder %s34, 1
      %p211 = por %p209, %p210
      %p213 = scmp.ne.s32.totalorder %s198, %s212
      %p214 = scmp.eq.s32.totalorder %s34, 0
      %p215 = por %p213, %p214
      %s217 = sadd.s32 %s216, 1
      %p220 = scmp.eq.s32.totalorder %s28, 1
      %p221 = scmp.ne.s32.totalorder %s216, %s218
      %p222 = scmp.eq.s32.totalorder %s28, 0
      %p223 = por %p221, %p222
      %p224 = scmp.ne.s32.totalorder %s216, %s218
      %p225 = scmp.eq.s32.totalorder %s33, 1
      %p226 = por %p224, %p225
      %p227 = scmp.ne.s32.totalorder %s218, %s219
      %p228 = scmp.eq.s32.totalorder %s33, 0
      %p229 = por %p227, %p228
      %p230 = scmp.ne.s32.totalorder %s218, %s219
      %p231 = scmp.eq.s32.totalorder %s34, 1
      %p232 = por %p230, %p231
      %p234 = scmp.ne.s32.totalorder %s219, %s233
      %p235 = scmp.eq.s32.totalorder %s34, 0
      %p236 = por %p234, %p235
      %s238 = sadd.s32 %s237, 1
      %p241 = scmp.eq.s32.totalorder %s28, 1
      %p242 = scmp.ne.s32.totalorder %s237, %s239
      %p243 = scmp.eq.s32.totalorder %s28, 0
      %p244 = por %p242, %p243
      %p245 = scmp.ne.s32.totalorder %s237, %s239
      %p246 = scmp.eq.s32.totalorder %s33, 1
      %p247 = por %p245, %p246
      %p248 = scmp.ne.s32.totalorder %s239, %s240
      %p249 = scmp.eq.s32.totalorder %s33, 0
      %p250 = por %p248, %p249
      %p251 = scmp.ne.s32.totalorder %s239, %s240
      %p252 = scmp.eq.s32.totalorder %s34, 1
      %p253 = por %p251, %p252
      %p255 = scmp.ne.s32.totalorder %s240, %s254
      %p256 = scmp.eq.s32.totalorder %s34, 0
      %p257 = por %p255, %p256
      %s259 = sadd.s32 %s258, 1
      %p262 = scmp.eq.s32.totalorder %s28, 1
      %p263 = scmp.ne.s32.totalorder %s258, %s260
      %p264 = scmp.eq.s32.totalorder %s28, 0
      %p265 = por %p263, %p264
      %p266 = scmp.ne.s32.totalorder %s258, %s260
      %p267 = scmp.eq.s32.totalorder %s33, 1
      %p268 = por %p266, %p267
      %p269 = scmp.ne.s32.totalorder %s260, %s261
      %p270 = scmp.eq.s32.totalorder %s33, 0
      %p271 = por %p269, %p270
      %p272 = scmp.ne.s32.totalorder %s260, %s261
      %p273 = scmp.eq.s32.totalorder %s34, 1
      %p274 = por %p272, %p273
      %p276 = scmp.ne.s32.totalorder %s261, %s275
      %p277 = scmp.eq.s32.totalorder %s34, 0
      %p278 = por %p276, %p277
      %s279 = ssub.s32 %s35, %s47
      %s280 = ssub.s32 %s36, %s43
      %s281 = sor.u32 %s279, %s280
      %p282 = scmp.eq.s32.totalorder %s281, 0
      %s284 = sadd.s32 %s283, 1
      %s285 = scalar_select %p282, %s283, %s284
      %p288 = pneg %p282
      %p289 = scmp.eq.s32.totalorder %s28, 1
      %p290 = por %p288, %p289
      %p291 = scmp.ne.s32.totalorder %s283, %s286
      %p292 = scmp.eq.s32.totalorder %s28, 0
      %p293 = por %p291, %p292
      %p294 = scmp.ne.s32.totalorder %s283, %s286
      %p295 = scmp.eq.s32.totalorder %s33, 1
      %p296 = por %p294, %p295
      %p297 = scmp.ne.s32.totalorder %s286, %s287
      %p298 = scmp.eq.s32.totalorder %s33, 0
      %p299 = por %p297, %p298
      %p300 = scmp.ne.s32.totalorder %s286, %s287
      %p301 = scmp.eq.s32.totalorder %s34, 1
      %p302 = por %p300, %p301
      %p304 = scmp.ne.s32.totalorder %s287, %s303
      %p305 = scmp.eq.s32.totalorder %s34, 0
      %p306 = por %p304, %p305
      %s307 = ssub.s32 %s35, %s47
      %s308 = ssub.s32 %s36, %s43
      %s309 = sor.u32 %s307, %s308
      %p310 = scmp.eq.s32.totalorder %s309, 0
      %s312 = sadd.s32 %s311, 1
      %s313 = scalar_select %p310, %s311, %s312
      %p316 = pneg %p310
      %p317 = scmp.eq.s32.totalorder %s28, 1
      %p318 = por %p316, %p317
      %p319 = scmp.ne.s32.totalorder %s311, %s314
      %p320 = scmp.eq.s32.totalorder %s28, 0
      %p321 = por %p319, %p320
      %p322 = scmp.ne.s32.totalorder %s311, %s314
      %p323 = scmp.eq.s32.totalorder %s33, 1
      %p324 = por %p322, %p323
      %p325 = scmp.ne.s32.totalorder %s314, %s315
      %p326 = scmp.eq.s32.totalorder %s33, 0
      %p327 = por %p325, %p326
      %p328 = scmp.ne.s32.totalorder %s314, %s315
      %p329 = scmp.eq.s32.totalorder %s34, 1
      %p330 = por %p328, %p329
      %p332 = scmp.ne.s32.totalorder %s315, %s331
      %p333 = scmp.eq.s32.totalorder %s34, 0
      %p334 = por %p332, %p333
      %s335 = ssub.s32 %s35, %s47
      %s336 = ssub.s32 %s36, %s43
      %s337 = sor.u32 %s335, %s336
      %p338 = scmp.eq.s32.totalorder %s337, 0
      %s340 = sadd.s32 %s339, 1
      %s341 = scalar_select %p338, %s339, %s340
      %p344 = pneg %p338
      %p345 = scmp.eq.s32.totalorder %s28, 1
      %p346 = por %p344, %p345
      %p347 = scmp.ne.s32.totalorder %s339, %s342
      %p348 = scmp.eq.s32.totalorder %s28, 0
      %p349 = por %p347, %p348
      %p350 = scmp.ne.s32.totalorder %s339, %s342
      %p351 = scmp.eq.s32.totalorder %s33, 1
      %p352 = por %p350, %p351
      %p353 = scmp.ne.s32.totalorder %s342, %s343
      %p354 = scmp.eq.s32.totalorder %s33, 0
      %p355 = por %p353, %p354
      %p356 = scmp.ne.s32.totalorder %s342, %s343
      %p357 = scmp.eq.s32.totalorder %s34, 1
      %p358 = por %p356, %p357
      %p360 = scmp.ne.s32.totalorder %s343, %s359
      %p361 = scmp.eq.s32.totalorder %s34, 0
      %p362 = por %p360, %p361
      %p363 = scmp.le.s32.totalorder 1, %s28
      %p364 = scmp.lt.s32.totalorder %s28, 3
      %p365 = pnand %p363, %p364
      %p366 = pneg %p365
      // Predicated region
      $region9: #{tpu_custom_call.1} parent=5 // pred_check
        _
      $region10: #{tpu_custom_call.1} parent=5 // pred_check_branch
        %368 = sbr.rel (%p365) target = $region12
      $region11: #{tpu_custom_call.1} parent=5 // pred_region
        %s369 = ssub.s32 %s28, 1
        // Predicated region
        $region13: #{tpu_custom_call.1} parent=11 // pred_check
          %p370 = pneg %p145
        $region14: #{tpu_custom_call.1} parent=11 // pred_check_branch
          %372 = sbr.rel (%p370) target = $region16
        $region15: #{tpu_custom_call.1} parent=11 // pred_region
          _
        $region16: #{tpu_custom_call.1} parent=11 // pred_fallthru
          _
        // Predicated region
        $region17: #{tpu_custom_call.1} parent=11 // pred_check
          %p373 = pneg %p166
        $region18: #{tpu_custom_call.1} parent=11 // pred_check_branch
          %375 = sbr.rel (%p373) target = $region20
        $region19: #{tpu_custom_call.1} parent=11 // pred_region
          _
        $region20: #{tpu_custom_call.1} parent=11 // pred_fallthru
          _
        // Predicated region
        $region21: #{tpu_custom_call.1} parent=11 // pred_check
          %p376 = pneg %p187
        $region22: #{tpu_custom_call.1} parent=11 // pred_check_branch
          %378 = sbr.rel (%p376) target = $region24
        $region23: #{tpu_custom_call.1} parent=11 // pred_region
          _
        $region24: #{tpu_custom_call.1} parent=11 // pred_fallthru
          _
        // Predicated region
        $region25: #{tpu_custom_call.1} parent=11 // pred_check
          %p379 = pneg %p208
        $region26: #{tpu_custom_call.1} parent=11 // pred_check_branch
          %381 = sbr.rel (%p379) target = $region28
        $region27: #{tpu_custom_call.1} parent=11 // pred_region
          _
        $region28: #{tpu_custom_call.1} parent=11 // pred_fallthru
          _
        // Predicated region
        $region29: #{tpu_custom_call.1} parent=11 // pred_check
          %p382 = pneg %p229
        $region30: #{tpu_custom_call.1} parent=11 // pred_check_branch
          %384 = sbr.rel (%p382) target = $region32
        $region31: #{tpu_custom_call.1} parent=11 // pred_region
          _
        $region32: #{tpu_custom_call.1} parent=11 // pred_fallthru
          _
        // Predicated region
        $region33: #{tpu_custom_call.1} parent=11 // pred_check
          %p385 = pneg %p250
        $region34: #{tpu_custom_call.1} parent=11 // pred_check_branch
          %387 = sbr.rel (%p385) target = $region36
        $region35: #{tpu_custom_call.1} parent=11 // pred_region
          _
        $region36: #{tpu_custom_call.1} parent=11 // pred_fallthru
          _
        // Predicated region
        $region37: #{tpu_custom_call.1} parent=11 // pred_check
          %p388 = pneg %p271
        $region38: #{tpu_custom_call.1} parent=11 // pred_check_branch
          %390 = sbr.rel (%p388) target = $region40
        $region39: #{tpu_custom_call.1} parent=11 // pred_region
          _
        $region40: #{tpu_custom_call.1} parent=11 // pred_fallthru
          _
      $region12: #{tpu_custom_call.1} parent=5 // pred_fallthru
        _
      %p391 = scmp.lt.s32.totalorder %s28, 2
      // Predicated region
      $region41: #{tpu_custom_call.1} parent=5 // pred_check
        %p392 = pneg %p391
      $region42: #{tpu_custom_call.1} parent=5 // pred_check_branch
        %394 = sbr.rel (%p392) target = $region44
      $region43: #{tpu_custom_call.1} parent=5 // pred_region
        // Predicated region
        $region45: #{tpu_custom_call.1} parent=43 // pred_check
          %p395 = pneg %p62
        $region46: #{tpu_custom_call.1} parent=43 // pred_check_branch
          %397 = sbr.rel (%p395) target = $region48
        $region47: #{tpu_custom_call.1} parent=43 // pred_region
          %s398 = smul.u32 2, %s36
          %p399 = scmp.lt.s32.totalorder %s35, 1
          %s400 = scalar_select %p399, %s35, 1
          %p401 = scmp.lt.s32.totalorder %s398, 1
          %s402 = scalar_select %p401, %s398, 1
          %s403 = smul.addr %s400, 2
          %s404 = sadd.s32 %s402, %s403
          %s405 = smul.addr %s404, 4
          %s406 = scalar_lea.vmem %s0, %s405
          %s407 = smul.u32 2, %s36
        $region48: #{tpu_custom_call.1} parent=43 // pred_fallthru
          _
        // Predicated region
        $region49: #{tpu_custom_call.1} parent=43 // pred_check
          %p408 = pneg %p90
        $region50: #{tpu_custom_call.1} parent=43 // pred_check_branch
          %410 = sbr.rel (%p408) target = $region52
        $region51: #{tpu_custom_call.1} parent=43 // pred_region
          %s411 = smul.u32 2, %s36
          %p412 = scmp.lt.s32.totalorder %s35, 1
          %s413 = scalar_select %p412, %s35, 1
          %p414 = scmp.lt.s32.totalorder %s411, 1
          %s415 = scalar_select %p414, %s411, 1
          %s416 = smul.addr %s413, 2
          %s417 = sadd.s32 %s415, %s416
          %s418 = smul.addr %s417, 8
          %s419 = scalar_lea.vmem %s1, %s418
          %s420 = smul.u32 2, %s36
        $region52: #{tpu_custom_call.1} parent=43 // pred_fallthru
          _
        // Predicated region
        $region53: #{tpu_custom_call.1} parent=43 // pred_check
          %p421 = pneg %p118
        $region54: #{tpu_custom_call.1} parent=43 // pred_check_branch
          %423 = sbr.rel (%p421) target = $region56
        $region55: #{tpu_custom_call.1} parent=43 // pred_region
          %s424 = sand.u32 %s108, 1
          %s425 = scalar_lea.sflag [#allocation3], %s424
          %s426 = sand.u32 %s108, 1
          %s427 = smul.addr %s426, 16
          %s428 = scalar_lea.vmem [#allocation2], %s427
          %s429 = smul.u32 2, %s36
          %431 = vsyncadd %s425, 0
          %s432 = smul.addr %s35, 2
          %s433 = sadd.s32 %s429, %s432
          %s434 = smul.addr %s433, 8
          %s435 = scalar_lea.hbm %s2, %s434
          %s437 = sshll.u32 %s435, 4
          %s438 = int_to_ptr.hbm [resolvable:$true] %s437
          %s439 = sshll.u32 %s428, 4
          %s440 = int_to_ptr.vmem [resolvable:$true] %s439
          %442 = dma.hbm_to_vmem [thread:$0]  %s438, 256, %s440, %s425
        $region56: #{tpu_custom_call.1} parent=43 // pred_fallthru
          _
      $region44: #{tpu_custom_call.1} parent=5 // pred_fallthru
        _
      %p443 = scmp.le.s32.totalorder 1, %s28
      %p444 = scmp.lt.s32.totalorder %s28, 3
      %p445 = pnand %p443, %p444
      %p446 = pneg %p445
      // Predicated region
      $region57: #{tpu_custom_call.1} parent=5 // pred_check
        _
      $region58: #{tpu_custom_call.1} parent=5 // pred_check_branch
        %448 = sbr.rel (%p445) target = $region60
      $region59: #{tpu_custom_call.1} parent=5 // pred_region
        %s449 = ssub.s32 %s28, 1
        %s450 = sand.u32 %s111, 1
        %s451 = scalar_lea.sflag [#allocation3], %s450
        %s452 = sand.u32 %s111, 1
        %s453 = smul.addr %s452, 16
        %s454 = scalar_lea.vmem [#allocation2], %s453
        // Predicated region
        $region61: #{tpu_custom_call.1} parent=59 // pred_check
          %p455 = pneg %p124
        $region62: #{tpu_custom_call.1} parent=59 // pred_check_branch
          %457 = sbr.rel (%p455) target = $region64
        $region63: #{tpu_custom_call.1} parent=59 // pred_region
          %459 = dma.done %s451, 256
        $region64: #{tpu_custom_call.1} parent=59 // pred_fallthru
          _
        %s460 = smul.u32 2, %s38
        %p461 = scmp.lt.s32.totalorder %s37, 1
        %s462 = scalar_select %p461, %s37, 1
        %p463 = scmp.lt.s32.totalorder %s460, 1
        %s464 = scalar_select %p463, %s460, 1
        %s465 = smul.addr %s462, 2
        %s466 = sadd.s32 %s464, %s465
        %s467 = smul.addr %s466, 4
        %s468 = scalar_lea.vmem %s0, %s467
        %p469 = pneg %p68
        %p470 = pneg %p65
        %s471 = smul.u32 2, %s38
        %p472 = scmp.lt.s32.totalorder %s37, 1
        %s473 = scalar_select %p472, %s37, 1
        %p474 = scmp.lt.s32.totalorder %s471, 1
        %s475 = scalar_select %p474, %s471, 1
        %s476 = smul.addr %s473, 2
        %s477 = sadd.s32 %s475, %s476
        %s478 = smul.addr %s477, 8
        %s479 = scalar_lea.vmem %s1, %s478
        %p480 = pneg %p96
        %p481 = pneg %p93
        %s482 = sand.u32 %s111, 1
        %s483 = scalar_lea.sflag [#allocation3], %s482
        %s484 = sand.u32 %s111, 1
        %s485 = smul.addr %s484, 16
        %s486 = scalar_lea.vmem [#allocation2], %s485
        %p487 = pneg %p124
        %p488 = pneg %p121
        %p489 = pneg %p145
        %p490 = pneg %p142
        %p491 = pneg %p166
        %p492 = pneg %p163
        %p493 = pneg %p187
        %p494 = pneg %p184
        %p495 = pneg %p208
        %p496 = pneg %p205
        %p497 = pneg %p229
        %p498 = pneg %p226
        %p499 = pneg %p250
        %p500 = pneg %p247
        %p501 = pneg %p271
        %p502 = pneg %p268
        %p503 = pneg %p299
        %p504 = pneg %p296
        %s505 = smul.u32 2, %s38
        %p506 = scmp.lt.s32.totalorder %s37, 1
        %s507 = scalar_select %p506, %s37, 1
        %p508 = scmp.lt.s32.totalorder %s505, 1
        %s509 = scalar_select %p508, %s505, 1
        %s510 = smul.addr %s507, 2
        %s511 = sadd.s32 %s509, %s510
        %s512 = smul.addr %s511, 4
        %s513 = scalar_lea.vmem %s10, %s512
        %p514 = pneg %p327
        %p515 = pneg %p324
        %s516 = sand.u32 %s314, 1
        %s517 = scalar_lea.sflag [#allocation4], %s516
        %s518 = sand.u32 %s314, 1
        %s519 = smul.addr %s518, 16
        %s520 = scalar_lea.vmem [#allocation5], %s519
        %p521 = pneg %p355
        %p522 = pneg %p352
        %s523 = sand.u32 %s342, 1
        %s524 = scalar_lea.sflag [#allocation7], %s523
        %s525 = sand.u32 %s342, 1
        %s526 = smul.addr %s525, 16
        %s527 = scalar_lea.vmem [#allocation6], %s526
        %s528 = smul.u32 2, %s38
        %p529 = scmp.lt.s32.totalorder %s37, 1
        %s530 = scalar_select %p529, %s37, 1
        %p531 = scmp.lt.s32.totalorder %s528, 1
        %s532 = scalar_select %p531, %s528, 1
        %s533 = smul.addr %s530, 2
        %s534 = sadd.s32 %s532, %s533
        %s535 = smul.addr %s534, 4
        %s536 = scalar_lea.vmem %s0, %s535
        %s537 = smul.u32 2, %s38
        %s538 = smul.u32 2, %s38
        %p539 = scmp.lt.s32.totalorder %s37, 1
        %s540 = scalar_select %p539, %s37, 1
        %p541 = scmp.lt.s32.totalorder %s538, 1
        %s542 = scalar_select %p541, %s538, 1
        %s543 = smul.addr %s540, 2
        %s544 = sadd.s32 %s542, %s543
        %s545 = smul.addr %s544, 8
        %s546 = scalar_lea.vmem %s1, %s545
        %s547 = smul.u32 2, %s38
        %s548 = smul.u32 2, %s38
        %s549 = smul.u32 2, %s38
        %p550 = scmp.lt.s32.totalorder %s37, 1
        %s551 = scalar_select %p550, %s37, 1
        %p552 = scmp.lt.s32.totalorder %s549, 1
        %s553 = scalar_select %p552, %s549, 1
        %s554 = smul.addr %s551, 2
        %s555 = sadd.s32 %s553, %s554
        %s556 = smul.addr %s555, 4
        %s557 = scalar_lea.vmem %s10, %s556
        %s558 = smul.u32 2, %s38
        %s559 = smul.u32 2, %s38
        %s560 = smul.u32 2, %s38
        %v561 = vld [vmem:[%s536] sm:$0x77]
        %v562 = vld [vmem:[%s546] sm:$0xff]
        %v563 = vld [vmem:[%s546 + $0x8] sm:$0xff]
        %v564 = vld [vmem:[%s454] sm:$0xff]
        %v565 = vld [vmem:[%s454 + $0x8] sm:$0xff]
        %v566 = vld [vmem:[%s4] sm:$0xff]
        %v567 = vld [vmem:[%s5] sm:$0xff]
        %569 = vset.pattern.permute.xlu0 0
        %570 = vperm.xlu0 %569, %v567
        %v571 = vpop.permute.xlu0 %570
        %574 = vst [vmem:[#allocation1] ss:$2 sm:$0xff] %v561
        %v575 = vld.sshfl [vmem:[#allocation1] sm:$0xff pattern:$0x75316420]
        %v576 = vld.sshfl [vmem:[#allocation1 + $0x8] sm:$0xff pattern:$0x75316420]
        %vm577 = vcmask 23552
        %v579 = vsel %vm577, %v566, 0
        %vm581 = vcmask 1042432
        %v582 = vsel %vm581, %v575, 0
        %v584 = vsel %vm581, %v576, 0
        %586 = vmatpush.msra.mxu0 0.0
        %587 = vmatpush.msra.mxu0 0.0
        %588 = vmatpush.msra.mxu0 0.0
        %589 = vmatpush.msra.mxu0 0.0
        %590 = vmatpush.msra.mxu0 0.0
        %591 = vmatpush.msra.mxu0 0.0
        %592 = vmatpush.msra.mxu0 0.0
        %593 = vmatpush.msra.mxu0 0.0
        %594 = vmatpush.msra.mxu0 0.0
        %595 = vmatpush.msra.mxu0 0.0
        %596 = vmatpush.msra.mxu0 0.0
        %597 = vmatpush.msra.mxu0 0.0
        %598 = vmatpush.msra.mxu0 0.0
        %599 = vmatpush.msra.mxu0 0.0
        %600 = vmatpush.msra.mxu0 0.0
        %601 = vmatpush.msra.mxu0 %v582
        %602 = vmatmul.f32.gmra.mxu0 %v579
        %v603 = vpop.f32.mrf.mxu0
        %v604 = vadd.f32 %v571, %v603
        %605 = vdwg.mxu0
        %606 = vmatpush.msra.mxu0 0.0
        %607 = vmatpush.msra.mxu0 0.0
        %608 = vmatpush.msra.mxu0 0.0
        %609 = vmatpush.msra.mxu0 0.0
        %610 = vmatpush.msra.mxu0 0.0
        %611 = vmatpush.msra.mxu0 0.0
        %612 = vmatpush.msra.mxu0 0.0
        %613 = vmatpush.msra.mxu0 0.0
        %614 = vmatpush.msra.mxu0 0.0
        %615 = vmatpush.msra.mxu0 0.0
        %616 = vmatpush.msra.mxu0 0.0
        %617 = vmatpush.msra.mxu0 0.0
        %618 = vmatpush.msra.mxu0 0.0
        %619 = vmatpush.msra.mxu0 0.0
        %620 = vmatpush.msra.mxu0 0.0
        %621 = vmatpush.msra.mxu0 %v584
        %622 = vmatmul.f32.gmra.mxu0 %v579
        %v623 = vpop.f32.mrf.mxu0
        %v624 = vadd.f32 %v571, %v623
        %625 = vdwg.mxu0
        %v626 = vmax.f32 %v604, 0.0
        %v627 = vmax.f32 %v624, 0.0
        %v628 = vadd.f32 %v626, %v562
        %v629 = vadd.f32 %v627, %v563
        %v630 = vtanh.pop %v628
        %v631 = vtanh.pop %v629
        %v632 = vld [vmem:[%s6] sm:$0xff]
        %v633 = vld [vmem:[%s7] sm:$0xff]
        %635 = vset.pattern.permute.xlu0 0
        %636 = vperm.xlu0 %635, %v633
        %v637 = vpop.permute.xlu0 %636
        %vm639 = vcmask 64512
        %v641 = vsel %vm639, %v632, 0
        %643 = vmatpush.msra.mxu0 0.0
        %644 = vmatpush.msra.mxu0 0.0
        %645 = vmatpush.msra.mxu0 0.0
        %646 = vmatpush.msra.mxu0 0.0
        %647 = vmatpush.msra.mxu0 0.0
        %648 = vmatpush.msra.mxu0 0.0
        %649 = vmatpush.msra.mxu0 0.0
        %650 = vmatpush.msra.mxu0 0.0
        %651 = vmatpush.msra.mxu0 0.0
        %652 = vmatpush.msra.mxu0 0.0
        %653 = vmatpush.msra.mxu0 0.0
        %654 = vmatpush.msra.mxu0 0.0
        %655 = vmatpush.msra.mxu0 0.0
        %656 = vmatpush.msra.mxu0 0.0
        %657 = vmatpush.msra.mxu0 0.0
        %658 = vmatpush.msra.mxu0 %v630
        %659 = vmatmul.f32.gmra.mxu0 %v641
        %v660 = vpop.f32.mrf.mxu0
        %v661 = vadd.f32 %v637, %v660
        %662 = vdwg.mxu0
        %663 = vmatpush.msra.mxu0 0.0
        %664 = vmatpush.msra.mxu0 0.0
        %665 = vmatpush.msra.mxu0 0.0
        %666 = vmatpush.msra.mxu0 0.0
        %667 = vmatpush.msra.mxu0 0.0
        %668 = vmatpush.msra.mxu0 0.0
        %669 = vmatpush.msra.mxu0 0.0
        %670 = vmatpush.msra.mxu0 0.0
        %671 = vmatpush.msra.mxu0 0.0
        %672 = vmatpush.msra.mxu0 0.0
        %673 = vmatpush.msra.mxu0 0.0
        %674 = vmatpush.msra.mxu0 0.0
        %675 = vmatpush.msra.mxu0 0.0
        %676 = vmatpush.msra.mxu0 0.0
        %677 = vmatpush.msra.mxu0 0.0
        %678 = vmatpush.msra.mxu0 %v631
        %679 = vmatmul.f32.gmra.mxu0 %v641
        %v680 = vpop.f32.mrf.mxu0
        %v681 = vadd.f32 %v637, %v680
        %682 = vdwg.mxu0
        %v683 = vld [vmem:[%s3] sm:$0xff]
        %685 = vset.pattern.permute.xlu0 0
        %686 = vperm.xlu0 %685, %v683
        %v687 = vpop.permute.xlu0 %686
        %v689 = vadd.f32 %v661, %v687
        %v690 = vadd.f32 %v681, %v687
        %v691 = vadd.f32 %v689, %v564
        %v692 = vadd.f32 %v690, %v565
        %v693 = vtanh.pop %v691
        %v694 = vtanh.pop %v692
        %v695 = vld [vmem:[%s8] sm:$0x7]
        %v696 = vld [vmem:[%s9] sm:$0x7]
        %698 = vset.pattern.permute.xlu0 0
        %699 = vperm.xlu0 %698, %v696
        %v700 = vpop.permute.xlu0 %699
        %v703 = vsel %vm639, %v695, 0
        %705 = vmatpush.msra.mxu0 0.0
        %706 = vmatpush.msra.mxu0 0.0
        %707 = vmatpush.msra.mxu0 0.0
        %708 = vmatpush.msra.mxu0 0.0
        %709 = vmatpush.msra.mxu0 0.0
        %710 = vmatpush.msra.mxu0 0.0
        %711 = vmatpush.msra.mxu0 0.0
        %712 = vmatpush.msra.mxu0 0.0
        %713 = vmatpush.msra.mxu0 0.0
        %714 = vmatpush.msra.mxu0 0.0
        %715 = vmatpush.msra.mxu0 0.0
        %716 = vmatpush.msra.mxu0 0.0
        %717 = vmatpush.msra.mxu0 0.0
        %718 = vmatpush.msra.mxu0 0.0
        %719 = vmatpush.msra.mxu0 0.0
        %720 = vmatpush.msra.mxu0 %v693
        %721 = vmatmul.f32.gmra.mxu0 %v703
        %v722 = vpop.f32.mrf.mxu0
        %v723 = vadd.f32 %v700, %v722
        %724 = vdwg.mxu0
        %725 = vmatpush.msra.mxu0 0.0
        %726 = vmatpush.msra.mxu0 0.0
        %727 = vmatpush.msra.mxu0 0.0
        %728 = vmatpush.msra.mxu0 0.0
        %729 = vmatpush.msra.mxu0 0.0
        %730 = vmatpush.msra.mxu0 0.0
        %731 = vmatpush.msra.mxu0 0.0
        %732 = vmatpush.msra.mxu0 0.0
        %733 = vmatpush.msra.mxu0 0.0
        %734 = vmatpush.msra.mxu0 0.0
        %735 = vmatpush.msra.mxu0 0.0
        %736 = vmatpush.msra.mxu0 0.0
        %737 = vmatpush.msra.mxu0 0.0
        %738 = vmatpush.msra.mxu0 0.0
        %739 = vmatpush.msra.mxu0 0.0
        %740 = vmatpush.msra.mxu0 %v694
        %741 = vmatmul.f32.gmra.mxu0 %v703
        %v742 = vpop.f32.mrf.mxu0
        %v743 = vadd.f32 %v700, %v742
        %744 = vdwg.mxu0
        %v745 = vxor.u32 %v723, 2147483648
        %v746 = vxor.u32 %v743, 2147483648
        %v747 = vmul.f32 %v745, 1.442695
        %v748 = vpow.pop %v747
        %v749 = vmul.f32 %v746, 1.442695
        %v750 = vpow.pop %v749
        %v751 = vadd.f32 %v748, 1.0
        %v752 = vadd.f32 %v750, 1.0
        %v753 = vrcp.pop %v751
        %v754 = vmul.f32 %v751, %v753
        %v755 = vsub.f32 1.0, %v754
        %v756 = vmul.f32 %v753, %v755
        %v757 = vadd.f32 %v753, %v756
        %vm758 = vweird.f32 %v751
        %vm759 = vweird.f32 %v753
        %vm760 = vmor %vm758, %vm759
        %v761 = vsel %vm760, %v753, %v757
        %v762 = vand.u32 2147483647, %v751
        %vm763 = vcmp.eq.f32.partialorder %v762, 8.507059e+37
        %v764 = vand.u32 %v751, 2147483648
        %v765 = vor.u32 1.1754944e-38, %v764
        %v766 = vsel %vm763, %v765, %v761
        %v767 = vmul.f32 1.0, %v766
        %v768 = vrcp.pop %v752
        %v769 = vmul.f32 %v752, %v768
        %v770 = vsub.f32 1.0, %v769
        %v771 = vmul.f32 %v768, %v770
        %v772 = vadd.f32 %v768, %v771
        %vm773 = vweird.f32 %v752
        %vm774 = vweird.f32 %v768
        %vm775 = vmor %vm773, %vm774
        %v776 = vsel %vm775, %v768, %v772
        %v777 = vand.u32 2147483647, %v752
        %vm778 = vcmp.eq.f32.partialorder %v777, 8.507059e+37
        %v779 = vand.u32 %v752, 2147483648
        %v780 = vor.u32 1.1754944e-38, %v779
        %v781 = vsel %vm778, %v780, %v776
        %v782 = vmul.f32 1.0, %v781
        %v785 = vrot.slane %v782, 4
        %vm786 = vcmask 1043456
        %v787 = vsel %vm786, %v767, %v785
        %789 = vst [vmem:[%s557] sm:$0x77] %v787
        %790 = vst [vmem:[%s520] sm:$0xff] %v630
        %791 = vst [vmem:[%s520 + $0x8] sm:$0xff] %v631
        %792 = vst [vmem:[%s527] sm:$0xff] %v693
        %793 = vst [vmem:[%s527 + $0x8] sm:$0xff] %v694
        %s794 = smul.u32 2, %s38
        %p795 = scmp.lt.s32.totalorder %s37, 1
        %s796 = scalar_select %p795, %s37, 1
        %p797 = scmp.lt.s32.totalorder %s794, 1
        %s798 = scalar_select %p797, %s794, 1
        %s799 = smul.addr %s796, 2
        %s800 = sadd.s32 %s798, %s799
        %s801 = smul.addr %s800, 4
        %s802 = scalar_lea.vmem %s10, %s801
        %s803 = sand.u32 %s314, 1
        %s804 = scalar_lea.sflag [#allocation4], %s803
        %s805 = sand.u32 %s314, 1
        %s806 = smul.addr %s805, 16
        %s807 = scalar_lea.vmem [#allocation5], %s806
        %s808 = sand.u32 %s342, 1
        %s809 = scalar_lea.sflag [#allocation7], %s808
        %s810 = sand.u32 %s342, 1
        %s811 = smul.addr %s810, 16
        %s812 = scalar_lea.vmem [#allocation6], %s811
        // Predicated region
        $region65: #{tpu_custom_call.1} parent=59 // pred_check
          %p813 = pneg %p296
        $region66: #{tpu_custom_call.1} parent=59 // pred_check_branch
          %815 = sbr.rel (%p813) target = $region68
        $region67: #{tpu_custom_call.1} parent=59 // pred_region
          %s816 = smul.u32 2, %s38
        $region68: #{tpu_custom_call.1} parent=59 // pred_fallthru
          _
        // Predicated region
        $region69: #{tpu_custom_call.1} parent=59 // pred_check
          %p817 = pneg %p324
        $region70: #{tpu_custom_call.1} parent=59 // pred_check_branch
          %819 = sbr.rel (%p817) target = $region72
        $region71: #{tpu_custom_call.1} parent=59 // pred_region
          %s820 = smul.u32 2, %s38
          %822 = vsyncadd %s804, 0
          %s823 = smul.addr %s37, 2
          %s824 = sadd.s32 %s820, %s823
          %s825 = smul.addr %s824, 8
          %s826 = scalar_lea.hbm %s11, %s825
          %s828 = sshll.u32 %s807, 4
          %s829 = int_to_ptr.vmem [resolvable:$true] %s828
          %s830 = sshll.u32 %s826, 4
          %s831 = int_to_ptr.hbm [resolvable:$true] %s830
          %833 = dma.vmem_to_hbm [thread:$0]  %s829, 256, %s831, %s804
        $region72: #{tpu_custom_call.1} parent=59 // pred_fallthru
          _
        // Predicated region
        $region73: #{tpu_custom_call.1} parent=59 // pred_check
          %p834 = pneg %p352
        $region74: #{tpu_custom_call.1} parent=59 // pred_check_branch
          %836 = sbr.rel (%p834) target = $region76
        $region75: #{tpu_custom_call.1} parent=59 // pred_region
          %s837 = smul.u32 2, %s38
          %839 = vsyncadd %s809, 0
          %s840 = smul.addr %s37, 2
          %s841 = sadd.s32 %s837, %s840
          %s842 = smul.addr %s841, 8
          %s843 = scalar_lea.hbm %s12, %s842
          %s845 = sshll.u32 %s812, 4
          %s846 = int_to_ptr.vmem [resolvable:$true] %s845
          %s847 = sshll.u32 %s843, 4
          %s848 = int_to_ptr.hbm [resolvable:$true] %s847
          %850 = dma.vmem_to_hbm [thread:$0]  %s846, 256, %s848, %s809
        $region76: #{tpu_custom_call.1} parent=59 // pred_fallthru
          _
      $region60: #{tpu_custom_call.1} parent=5 // pred_fallthru
        _
      %p851 = scmp.le.s32.totalorder 2, %s28
      // Predicated region
      $region77: #{tpu_custom_call.1} parent=5 // pred_check
        %p852 = pneg %p851
      $region78: #{tpu_custom_call.1} parent=5 // pred_check_branch
        %854 = sbr.rel (%p852) target = $region80
      $region79: #{tpu_custom_call.1} parent=5 // pred_region
        %s855 = ssub.s32 %s28, 2
        // Predicated region
        $region81: #{tpu_custom_call.1} parent=79 // pred_check
          %p856 = pneg %p302
        $region82: #{tpu_custom_call.1} parent=79 // pred_check_branch
          %858 = sbr.rel (%p856) target = $region84
        $region83: #{tpu_custom_call.1} parent=79 // pred_region
          %s859 = smul.u32 2, %s40
          %p860 = scmp.lt.s32.totalorder %s39, 1
          %s861 = scalar_select %p860, %s39, 1
          %p862 = scmp.lt.s32.totalorder %s859, 1
          %s863 = scalar_select %p862, %s859, 1
          %s864 = smul.addr %s861, 2
          %s865 = sadd.s32 %s863, %s864
          %s866 = smul.addr %s865, 4
          %s867 = scalar_lea.vmem %s10, %s866
        $region84: #{tpu_custom_call.1} parent=79 // pred_fallthru
          _
        // Predicated region
        $region85: #{tpu_custom_call.1} parent=79 // pred_check
          %p868 = pneg %p330
        $region86: #{tpu_custom_call.1} parent=79 // pred_check_branch
          %870 = sbr.rel (%p868) target = $region88
        $region87: #{tpu_custom_call.1} parent=79 // pred_region
          %s871 = sand.u32 %s315, 1
          %s872 = scalar_lea.sflag [#allocation4], %s871
          %s873 = sand.u32 %s315, 1
          %s874 = smul.addr %s873, 16
          %s875 = scalar_lea.vmem [#allocation5], %s874
          %877 = dma.done %s872, 256
        $region88: #{tpu_custom_call.1} parent=79 // pred_fallthru
          _
        // Predicated region
        $region89: #{tpu_custom_call.1} parent=79 // pred_check
          %p878 = pneg %p358
        $region90: #{tpu_custom_call.1} parent=79 // pred_check_branch
          %880 = sbr.rel (%p878) target = $region92
        $region91: #{tpu_custom_call.1} parent=79 // pred_region
          %s881 = sand.u32 %s343, 1
          %s882 = scalar_lea.sflag [#allocation7], %s881
          %s883 = sand.u32 %s343, 1
          %s884 = smul.addr %s883, 16
          %s885 = scalar_lea.vmem [#allocation6], %s884
          %887 = dma.done %s882, 256
        $region92: #{tpu_custom_call.1} parent=79 // pred_fallthru
          _
      $region80: #{tpu_custom_call.1} parent=5 // pred_fallthru
        _
    $region6: #{tpu_custom_call.1} parent=1 // loop_footer
      %s32 = sadd.s32 1, %s28
    $region7: #{tpu_custom_call.1} parent=1 // loop_footer_branch
      %27 = sbr.rel target = $region3
    $region8: #{tpu_custom_call.1} parent=1 // loop_exit
      _
    %888 = vsyncpa [#allocation3], 1
    %s889 = scalar_lea.sflag [#allocation3], 1
    %890 = vsyncpa %s889, 1
    %891 = vsyncpa [#allocation4], 1
    %s892 = scalar_lea.sflag [#allocation4], 1
    %893 = vsyncpa %s892, 1
    %894 = vsyncpa [#allocation7], 1
    %s895 = scalar_lea.sflag [#allocation7], 1
    %896 = vsyncpa %s895, 1

</llo_original>
